<compile_context>
chip_gen: v6e
topology: v6e:2x2x1
jax: 0.10.0
libtpu: 0.0.40
codegen_flags: <defaults>
</compile_context>

<pallas_src>
import functools

import jax
import jax.numpy as jnp
from jax.experimental import pallas as pl
from jax.experimental.pallas import tpu as pltpu

EPS = 1e-5  # PyTorch BatchNorm2d default eps

_MIN_BLOCK_BYTES = 2 * 1024 * 1024      # keep per-step input DMAs multi-MiB when splitting
_DEFAULT_VMEM_CAP = 64 * 1024 * 1024    # conservative (v7x-sized) fallback


def _vmem_capacity_bytes():
    try:
        info = pltpu.get_tpu_info()
        cap = int(getattr(info, "vmem_capacity_bytes", 0) or 0)
        if cap > 0:
            return cap
    except Exception:
        pass
    return _DEFAULT_VMEM_CAP


def _sublane_multiple(dtype):
    # Packed-sublane granularity: 8 for 32-bit, 16 for bf16/f16, 32 for int8/fp8.
    return max(8, 32 // jnp.dtype(dtype).itemsize)


# ----------------------------- kernels ---------------------------------------------------


def _bn_fused_kernel(x_ref, gamma_ref, beta_ref, o_ref):
    """Single-pass BN over one channel tile. x_ref: (N, TC, HW) covering full N and HW."""
    x = x_ref[...].astype(jnp.float32)
    inv_count = 1.0 / float(x.shape[0] * x.shape[2])
    s = jnp.sum(x, axis=(0, 2), keepdims=True)                       # (1, TC, 1)
    sq = jnp.sum(x * x, axis=(0, 2), keepdims=True)
    mean = s * inv_count
    var = jnp.maximum(sq * inv_count - mean * mean, 0.0)             # biased (training) var
    scale = jax.lax.rsqrt(var + EPS) * gamma_ref[...]
    shift = beta_ref[...] - mean * scale
    o_ref[...] = (x * scale + shift).astype(o_ref.dtype)


def _bn_stats_kernel(x_ref, sum_ref, sq_ref, *, hw_total, thw):
    """Two-pass fallback, pass 1: accumulate per-channel sum / sumsq over HW chunks."""
    h = pl.program_id(1)

    @pl.when(h == 0)
    def _():
        sum_ref[...] = jnp.zeros_like(sum_ref)
        sq_ref[...] = jnp.zeros_like(sq_ref)

    x = x_ref[...].astype(jnp.float32)                               # (N, TC, THW)
    if hw_total % thw != 0:
        # Mask out-of-range lanes of the last (remainder) chunk so padded elements never
        # enter the sums; the true count is applied in the wrapper.
        lane = jax.lax.broadcasted_iota(jnp.int32, x.shape, dimension=2)
        x = jnp.where(h * thw + lane < hw_total, x, 0.0)
    sum_ref[...] += jnp.sum(x, axis=(0, 2), keepdims=True)
    sq_ref[...] += jnp.sum(x * x, axis=(0, 2), keepdims=True)


def _bn_apply_kernel(x_ref, scale_ref, shift_ref, o_ref):
    """Two-pass fallback, pass 2: y = x * scale + shift with per-channel scale/shift."""
    x = x_ref[...].astype(jnp.float32)
    o_ref[...] = (x * scale_ref[...] + shift_ref[...]).astype(o_ref.dtype)


# ----------------------------- tiling heuristics ------------------------------------------


def _choose_channel_tile(n, c, hw, itemsize, mult, budget):
    """Channel tile for the fused single-pass kernel, or None if the two-pass fallback is
    required (even the minimal legal tile does not fit the VMEM budget)."""
    # Working set per channel of one fused step: double-buffered input + output blocks plus
    # one full-block f32 temporary (the upcast of x).
    per_channel = n * hw * (4 * itemsize + 4)
    candidates = sorted(set(list(range(mult, c + 1, mult)) + [c]), reverse=True)
    fitting = [t for t in candidates if t * per_channel <= budget]
    if not fitting:
        return None
    tc = max(fitting)

    def n_steps(t):
        return (c + t - 1) // t

    def block_bytes(t):
        return n * hw * t * itemsize

    # Prefer >= 4 (at least 2) grid steps so DMA of step i+1 overlaps compute of step i and
    # both v7x TensorCores get work — but only while per-step blocks stay multi-MiB.
    for target in (4, 2):
        if n_steps(tc) >= target:
            break
        shrink = [t for t in fitting
                  if n_steps(t) >= target and block_bytes(t) >= _MIN_BLOCK_BYTES]
        if shrink:
            tc = max(shrink)
            break
    return tc


def _choose_two_pass_tiles(n, c, hw, itemsize, mult, budget, force_thw=None):
    """Channel tile and HW-chunk size for the two-pass fallback."""
    tc = c if c <= mult else mult                   # minimal legal channel tile
    per_hw = n * tc * (4 * itemsize + 4)            # normalize pass dominates the stats pass
    max_thw = max(1, budget // max(per_hw, 1))
    thw = max(128, (max_thw // 128) * 128)          # lane-dense chunks (multiple of 128)
    thw = min(thw, max(128, -(-hw // 128) * 128))   # never larger than rounded-up HW
    if force_thw is not None:
        thw = int(force_thw)
    return tc, thw


# ----------------------------- wrapper ----------------------------------------------------


def batchnorm2d_wrap(x_nchw, gamma, beta, *, force_two_pass=False, _force_thw=None):
    """Forward of BatchNorm2dWrap (training-mode batch statistics).

    x_nchw: (N, C, H, W); gamma, beta: (C,). Returns (N, C, H, W), same dtype as x_nchw.
    """
    N, C, H, W = x_nchw.shape
    HW = H * W
    out_dtype = x_nchw.dtype
    itemsize = jnp.dtype(x_nchw.dtype).itemsize
    mult = _sublane_multiple(x_nchw.dtype)

    vmem_cap = _vmem_capacity_bytes()
    vmem_limit = int(vmem_cap * 3 // 4)
    vmem_budget = int(vmem_cap // 2)

    # Free reshapes only — no HBM transpose traffic.
    x3 = x_nchw.reshape(N, C, HW)
    gamma3 = gamma.reshape(1, C, 1).astype(jnp.float32)
    beta3 = beta.reshape(1, C, 1).astype(jnp.float32)

    io_bytes = 2 * x3.size * itemsize

    tc = None if force_two_pass else _choose_channel_tile(N, C, HW, itemsize, mult, vmem_budget)

    if tc is not None:
        # -------- fast path: fused single pass over channel tiles --------
        grid = (pl.cdiv(C, tc),)
        out3 = pl.pallas_call(
            _bn_fused_kernel,
            out_shape=jax.ShapeDtypeStruct((N, C, HW), out_dtype),
            grid_spec=pltpu.PrefetchScalarGridSpec(
                num_scalar_prefetch=0,
                grid=grid,
                in_specs=[
                    pl.BlockSpec((N, tc, HW), lambda c: (0, c, 0)),
                    pl.BlockSpec((1, tc, 1), lambda c: (0, c, 0)),
                    pl.BlockSpec((1, tc, 1), lambda c: (0, c, 0)),
                ],
                out_specs=pl.BlockSpec((N, tc, HW), lambda c: (0, c, 0)),
            ),
            compiler_params=pltpu.CompilerParams(
                dimension_semantics=("parallel",),
                vmem_limit_bytes=vmem_limit,
            ),
            cost_estimate=pl.CostEstimate(
                flops=6 * x3.size, transcendentals=C, bytes_accessed=io_bytes),
        )(x3, gamma3, beta3)
        return out3.reshape(N, C, H, W)

    # -------- two-pass fallback: pipeline-sized blocks for arbitrarily large N*H*W --------
    tc2, thw = _choose_two_pass_tiles(N, C, HW, itemsize, mult, vmem_budget, _force_thw)
    c_steps = pl.cdiv(C, tc2)
    h_steps = pl.cdiv(HW, thw)

    stats_kernel = functools.partial(_bn_stats_kernel, hw_total=HW, thw=thw)
    s, sq = pl.pallas_call(
        stats_kernel,
        out_shape=(jax.ShapeDtypeStruct((1, C, 1), jnp.float32),
                   jax.ShapeDtypeStruct((1, C, 1), jnp.float32)),
        grid_spec=pltpu.PrefetchScalarGridSpec(
            num_scalar_prefetch=0,
            grid=(c_steps, h_steps),
            in_specs=[pl.BlockSpec((N, tc2, thw), lambda c, h: (0, c, h))],
            out_specs=[pl.BlockSpec((1, tc2, 1), lambda c, h: (0, c, 0)),
                       pl.BlockSpec((1, tc2, 1), lambda c, h: (0, c, 0))],
        ),
        compiler_params=pltpu.CompilerParams(
            dimension_semantics=("parallel", "arbitrary"),
            vmem_limit_bytes=vmem_limit,
        ),
        cost_estimate=pl.CostEstimate(
            flops=3 * x3.size, transcendentals=0, bytes_accessed=x3.size * itemsize),
    )(x3)

    # Per-channel scale/shift from the TRUE element count (padded chunks were masked out).
    inv_count = 1.0 / float(N * HW)
    mean = s * inv_count
    var = jnp.maximum(sq * inv_count - mean * mean, 0.0)
    scale = jax.lax.rsqrt(var + EPS) * gamma3
    shift = beta3 - mean * scale

    out3 = pl.pallas_call(
        _bn_apply_kernel,
        out_shape=jax.ShapeDtypeStruct((N, C, HW), out_dtype),
        grid_spec=pltpu.PrefetchScalarGridSpec(
            num_scalar_prefetch=0,
            grid=(c_steps, h_steps),
            in_specs=[
                pl.BlockSpec((N, tc2, thw), lambda c, h: (0, c, h)),
                pl.BlockSpec((1, tc2, 1), lambda c, h: (0, c, 0)),
                pl.BlockSpec((1, tc2, 1), lambda c, h: (0, c, 0)),
            ],
            out_specs=pl.BlockSpec((N, tc2, thw), lambda c, h: (0, c, h)),
        ),
        compiler_params=pltpu.CompilerParams(
            dimension_semantics=("parallel", "parallel"),
            vmem_limit_bytes=vmem_limit,
        ),
        cost_estimate=pl.CostEstimate(
            flops=2 * x3.size, transcendentals=0, bytes_accessed=io_bytes),
    )(x3, scale, shift)
    return out3.reshape(N, C, H, W)


# ----------------------------- demo / self-test -------------------------------------------

if __name__ == "__main__":
    key = jax.random.PRNGKey(0)
    kx, kg, kb = jax.random.split(key, 3)

    def ref_bn(x, gamma, beta):
        mean = jnp.mean(x, axis=(0, 2, 3), keepdims=True)
        var = jnp.mean((x - mean) ** 2, axis=(0, 2, 3), keepdims=True)
        return ((x - mean) / jnp.sqrt(var + EPS) * gamma.reshape(1, -1, 1, 1)
                + beta.reshape(1, -1, 1, 1))

    # Main (fused single-pass) path at the nominal small shape.
    N, C, H, W = 2, 4, 16, 16
    x = jax.random.normal(kx, (N, C, H, W), dtype=jnp.float32) * 2.0 + 0.5
    gamma = 1.0 + 0.1 * jax.random.normal(kg, (C,), dtype=jnp.float32)
    beta = 0.1 * jax.random.normal(kb, (C,), dtype=jnp.float32)

    out = jax.block_until_ready(batchnorm2d_wrap(x, gamma, beta))
    ref = ref_bn(x, gamma, beta)
    assert out.shape == (N, C, H, W)
    assert jnp.allclose(out, ref, atol=1e-4, rtol=1e-5), float(jnp.max(jnp.abs(out - ref)))

    # Exercise the two-pass (large-input) fallback at a small shape: forces HW chunking with
    # a remainder chunk (H*W = 192 with thw = 128) and a channel remainder tile (C = 12).
    N2, C2, H2, W2 = 2, 12, 16, 12
    x2 = jax.random.normal(kx, (N2, C2, H2, W2), dtype=jnp.float32) * 1.5 - 0.25
    g2 = 1.0 + 0.05 * jax.random.normal(kg, (C2,), dtype=jnp.float32)
    b2 = 0.05 * jax.random.normal(kb, (C2,), dtype=jnp.float32)
    out2 = jax.block_until_ready(
        batchnorm2d_wrap(x2, g2, b2, force_two_pass=True, _force_thw=128))
    ref2 = ref_bn(x2, g2, b2)
    assert jnp.allclose(out2, ref2, atol=1e-4, rtol=1e-5), float(jnp.max(jnp.abs(out2 - ref2)))

    print("KERNEL_OK")
</pallas_src>

<mosaic_0001>
module attributes {stable_mosaic.version = 11 : i64} {
  func.func @_bn_fused_kernel(%arg0: i32, %arg1: memref<2x4x256xf32, #tpu.memory_space<vmem>>, %arg2: memref<1x4x1xf32, #tpu.memory_space<vmem>>, %arg3: memref<1x4x1xf32, #tpu.memory_space<vmem>>, %arg4: memref<2x4x256xf32, #tpu.memory_space<vmem>>) attributes {dimension_semantics = [#tpu.dimension_semantics<parallel>], iteration_bounds = array<i64: 1>, scalar_prefetch = 0 : i64, scratch_operands = 0 : i64, tpu.core_type = #tpu.core_type<tc>, window_params = [{transform_indices = @transform_0, window_bounds = array<i64: 2, 4, 256>}, {transform_indices = @transform_1, window_bounds = array<i64: 1, 4, 1>}, {transform_indices = @transform_2, window_bounds = array<i64: 1, 4, 1>}, {transform_indices = @transform_3, window_bounds = array<i64: 2, 4, 256>}]} {
    %c0 = arith.constant 0 : index
    %c0_0 = arith.constant 0 : index
    %c0_1 = arith.constant 0 : index
    %0 = vector.load %arg1[%c0, %c0_0, %c0_1] : memref<2x4x256xf32, #tpu.memory_space<vmem>>, vector<2x4x256xf32>
    %cst = arith.constant dense<0.000000e+00> : vector<4xf32>
    %1 = vector.multi_reduction <add>, %0, %cst [0, 2] : vector<2x4x256xf32> to vector<4xf32>
    %2 = vector.shape_cast %1 : vector<4xf32> to vector<1x4x1xf32>
    %3 = arith.mulf %0, %0 : vector<2x4x256xf32>
    %cst_2 = arith.constant dense<0.000000e+00> : vector<4xf32>
    %4 = vector.multi_reduction <add>, %3, %cst_2 [0, 2] : vector<2x4x256xf32> to vector<4xf32>
    %5 = vector.shape_cast %4 : vector<4xf32> to vector<1x4x1xf32>
    %cst_3 = arith.constant 0.001953125 : f32
    %6 = vector.broadcast %cst_3 : f32 to vector<1x4x1xf32>
    %7 = arith.mulf %2, %6 : vector<1x4x1xf32>
    %cst_4 = arith.constant 0.001953125 : f32
    %8 = vector.broadcast %cst_4 : f32 to vector<1x4x1xf32>
    %9 = arith.mulf %5, %8 : vector<1x4x1xf32>
    %10 = arith.mulf %7, %7 : vector<1x4x1xf32>
    %11 = arith.subf %9, %10 : vector<1x4x1xf32>
    %cst_5 = arith.constant 0.000000e+00 : f32
    %12 = vector.broadcast %cst_5 : f32 to vector<1x4x1xf32>
    %13 = arith.maximumf %11, %12 : vector<1x4x1xf32>
    %cst_6 = arith.constant 9.99999974E-6 : f32
    %14 = vector.broadcast %cst_6 : f32 to vector<1x4x1xf32>
    %15 = arith.addf %13, %14 : vector<1x4x1xf32>
    %16 = math.rsqrt %15 : vector<1x4x1xf32>
    %c0_7 = arith.constant 0 : index
    %c0_8 = arith.constant 0 : index
    %c0_9 = arith.constant 0 : index
    %17 = vector.load %arg2[%c0_7, %c0_8, %c0_9] : memref<1x4x1xf32, #tpu.memory_space<vmem>>, vector<1x4x1xf32>
    %18 = arith.mulf %16, %17 : vector<1x4x1xf32>
    %c0_10 = arith.constant 0 : index
    %c0_11 = arith.constant 0 : index
    %c0_12 = arith.constant 0 : index
    %19 = vector.load %arg3[%c0_10, %c0_11, %c0_12] : memref<1x4x1xf32, #tpu.memory_space<vmem>>, vector<1x4x1xf32>
    %20 = arith.mulf %7, %18 : vector<1x4x1xf32>
    %21 = arith.subf %19, %20 : vector<1x4x1xf32>
    %22 = vector.broadcast %18 : vector<1x4x1xf32> to vector<2x4x256xf32>
    %23 = arith.mulf %0, %22 : vector<2x4x256xf32>
    %24 = vector.broadcast %21 : vector<1x4x1xf32> to vector<2x4x256xf32>
    %25 = arith.addf %23, %24 : vector<2x4x256xf32>
    %c0_13 = arith.constant 0 : index
    %c0_14 = arith.constant 0 : index
    %c0_15 = arith.constant 0 : index
    %26 = vector.load %arg4[%c0_13, %c0_14, %c0_15] : memref<2x4x256xf32, #tpu.memory_space<vmem>>, vector<2x4x256xf32>
    tpu.vector_store %arg4[%c0_13, %c0_14, %c0_15], %25 {strides = array<i32>} : memref<2x4x256xf32, #tpu.memory_space<vmem>>, vector<2x4x256xf32>,
    return
  }
  func.func @transform_0(%arg0: i32) -> (i32, i32, i32) {
    %c0_i32 = arith.constant 0 : i32
    %c0_i32_0 = arith.constant 0 : i32
    %c0_i32_1 = arith.constant 0 : i32
    return %c0_i32, %arg0, %c0_i32_0 : i32, i32, i32
  }
  func.func @transform_1(%arg0: i32) -> (i32, i32, i32) {
    %c0_i32 = arith.constant 0 : i32
    %c0_i32_0 = arith.constant 0 : i32
    %c0_i32_1 = arith.constant 0 : i32
    return %c0_i32, %arg0, %c0_i32_0 : i32, i32, i32
  }
  func.func @transform_2(%arg0: i32) -> (i32, i32, i32) {
    %c0_i32 = arith.constant 0 : i32
    %c0_i32_0 = arith.constant 0 : i32
    %c0_i32_1 = arith.constant 0 : i32
    return %c0_i32, %arg0, %c0_i32_0 : i32, i32, i32
  }
  func.func @transform_3(%arg0: i32) -> (i32, i32, i32) {
    %c0_i32 = arith.constant 0 : i32
    %c0_i32_0 = arith.constant 0 : i32
    %c0_i32_1 = arith.constant 0 : i32
    return %c0_i32, %arg0, %c0_i32_0 : i32, i32, i32
  }
}

</mosaic_0001>

<llo_original>
// kernel: tpu_custom_call.1
$region0: #{tpu_custom_call.1}
  #allocation0 [shape = 'u32[]', space=smem, size = 0x4, offset = 0x4, fixed_abs, tag = 'smem constant byte address 0x4 - core index']
  #allocation1 [shape = 'u32[144,128]{1,0:T(1,128)}', space=vmem, size = 0x12000, scoped, tag = 'internal scratch']
  %s0 = inlined_call_operand.hbm [shape: f32[2,4,256], index: 0, kind: input, shape index: {}]
  %s1 = inlined_call_operand.vmem [shape: f32[1,4,1], index: 1, kind: input, shape index: {}]
  %s2 = inlined_call_operand.vmem [shape: f32[1,4,1], index: 2, kind: input, shape index: {}]
  %s3 = inlined_call_operand.hbm [shape: f32[2,4,256], index: 3, kind: output, shape index: {}]
  %s4 = sld [smem:[#allocation0]]
  $region26: #{tpu_custom_call.1} parent=0
    _
  %s6 = ssub.s32 1, %s4
  %s7 = scalar_select 0, %s6, %s4
  $region1: #{tpu_custom_call.1} parent=0
    #allocation2 [shape = 'u8[8192]{0}', space=vmem, size = 0x2000, scoped, tag = 'input window, operand 0, single buffered']
    #allocation3 [shape = 's32[1]{0}', space=sflag, size = 0x4, scoped, tag = 'scoped memory for tpu_custom_call.1']
    #allocation4 [shape = 's32[1]{0}', space=sflag, size = 0x4, scoped, tag = 'scoped memory for tpu_custom_call.1']
    #allocation5 [shape = 'u8[8192]{0}', space=vmem, size = 0x2000, scoped, tag = 'output window, operand 0, single buffered']
    %8 = vsyncpa [#allocation3], 0
    %9 = vsyncpa [#allocation4], 0
    // Predicated region
    $region2: #{tpu_custom_call.1} parent=1 // pred_check
      _
    $region3: #{tpu_custom_call.1} parent=1 // pred_check_branch
      %11 = sbr.rel (0) target = $region5
    $region4: #{tpu_custom_call.1} parent=1 // pred_region
      %s13 = ssub.s32 256, 256
      %14 = vsyncadd [#allocation3], %s13
      %s15 = sshll.u32 [#allocation2], 4
      %s16 = int_to_ptr.vmem [resolvable:$true] %s15
      %21 = dma.hbm_to_vmem [thread:$0]  %s0, 256, %s16, [#allocation3], 128, 128, 8
    $region5: #{tpu_custom_call.1} parent=1 // pred_fallthru
      _
    // Predicated region
    $region6: #{tpu_custom_call.1} parent=1 // pred_check
      _
    $region7: #{tpu_custom_call.1} parent=1 // pred_check_branch
      %23 = sbr.rel (0) target = $region9
    $region8: #{tpu_custom_call.1} parent=1 // pred_region
      _
    $region9: #{tpu_custom_call.1} parent=1 // pred_fallthru
      _
    // Predicated region
    $region10: #{tpu_custom_call.1} parent=1 // pred_check
      _
    $region11: #{tpu_custom_call.1} parent=1 // pred_check_branch
      %25 = sbr.rel (0) target = $region13
    $region12: #{tpu_custom_call.1} parent=1 // pred_region
      _
    $region13: #{tpu_custom_call.1} parent=1 // pred_fallthru
      _
    // Predicated region
    $region14: #{tpu_custom_call.1} parent=1 // pred_check
      _
    $region15: #{tpu_custom_call.1} parent=1 // pred_check_branch
      %27 = sbr.rel (0) target = $region17
    $region16: #{tpu_custom_call.1} parent=1 // pred_region
      %28 = dma.done [#allocation3], 256
    $region17: #{tpu_custom_call.1} parent=1 // pred_fallthru
      _
    %v29 = vld [vmem:[#allocation2] sm:$0xff]
    %v30 = vld [vmem:[#allocation2 + $0x8] sm:$0xff]
    %v33 = vcombine.high %v29, %v29
    %v34 = vcombine.high %v30, %v30
    %vm37 = vcmask 1043456
    %v38 = vsel %vm37, %v29, 0.0
    %v39 = vsel %vm37, %v33, 0.0
    %v40 = vadd.f32 %v38, %v39
    %v41 = vsel %vm37, %v30, 0.0
    %v42 = vadd.f32 %v40, %v41
    %v43 = vsel %vm37, %v34, 0.0
    %v44 = vadd.f32 %v42, %v43
    %45 = vadd.xlane.f32.xlu0 %v44
    %v46 = vpop.xlane.xlu0 %45
    %v47 = vmul.f32 %v29, %v29
    %v48 = vmul.f32 %v30, %v30
    %v51 = vcombine.high %v47, %v47
    %v52 = vcombine.high %v48, %v48
    %v55 = vsel %vm37, %v47, 0.0
    %v56 = vsel %vm37, %v51, 0.0
    %v57 = vadd.f32 %v55, %v56
    %v58 = vsel %vm37, %v48, 0.0
    %v59 = vadd.f32 %v57, %v58
    %v60 = vsel %vm37, %v52, 0.0
    %v61 = vadd.f32 %v59, %v60
    %62 = vadd.xlane.f32.xlu0 %v61
    %v63 = vpop.xlane.xlu0 %62
    %v64 = vmul.f32 %v46, 0.001953125
    %v65 = vmul.f32 %v63, 0.001953125
    %v66 = vmul.f32 %v64, %v64
    %v67 = vsub.f32 %v65, %v66
    %v68 = vmax.f32 %v67, 0.0
    %v69 = vadd.f32 %v68, 1e-05
    %v70 = vrsqrt.pop %v69
    %v71 = vld [vmem:[%s1] sm:$0xf]
    %v72 = vmul.f32 %v70, %v71
    %v73 = vld [vmem:[%s2] sm:$0xf]
    %v74 = vmul.f32 %v64, %v72
    %v75 = vsub.f32 %v73, %v74
    %77 = vset.pattern.permute.xlu0 0
    %78 = vperm.xlu0 %77, %v72
    %v79 = vpop.permute.xlu0 %78
    %v81 = vunpack.c.l.s4 839922192
    %v82 = vunpack.c.0.s8 %v81
    %v83 = vlaneseq
    %v84 = vshrl.u32 %v83, 7
    %v85 = vsub.s32 %v82, %v84
    %v86 = vrot.slane %v79, %v85
    %v88 = vmul.f32 %v29, %v86
    %v89 = vmul.f32 %v30, %v86
    %91 = vset.pattern.permute.xlu0 0
    %92 = vperm.xlu0 %91, %v75
    %v93 = vpop.permute.xlu0 %92
    %v95 = vunpack.c.l.s4 839922192
    %v96 = vunpack.c.0.s8 %v95
    %v97 = vlaneseq
    %v98 = vshrl.u32 %v97, 7
    %v99 = vsub.s32 %v96, %v98
    %v100 = vrot.slane %v93, %v99
    %v102 = vadd.f32 %v88, %v100
    %v103 = vadd.f32 %v89, %v100
    %104 = vst [vmem:[#allocation5] sm:$0xff] %v102
    %105 = vst [vmem:[#allocation5 + $0x8] sm:$0xff] %v103
    // Predicated region
    $region18: #{tpu_custom_call.1} parent=1 // pred_check
      _
    $region19: #{tpu_custom_call.1} parent=1 // pred_check_branch
      %107 = sbr.rel (0) target = $region21
    $region20: #{tpu_custom_call.1} parent=1 // pred_region
      %s109 = ssub.s32 256, 256
      %110 = vsyncadd [#allocation4], %s109
      %s111 = sshll.u32 [#allocation5], 4
      %s112 = int_to_ptr.vmem [resolvable:$true] %s111
      %117 = dma.vmem_to_hbm [thread:$0]  %s112, 256, %s3, [#allocation4], 128, 128, 8
    $region21: #{tpu_custom_call.1} parent=1 // pred_fallthru
      _
    // Predicated region
    $region22: #{tpu_custom_call.1} parent=1 // pred_check
      _
    $region23: #{tpu_custom_call.1} parent=1 // pred_check_branch
      %119 = sbr.rel (0) target = $region25
    $region24: #{tpu_custom_call.1} parent=1 // pred_region
      %120 = dma.done [#allocation4], 256
    $region25: #{tpu_custom_call.1} parent=1 // pred_fallthru
      _
    %121 = vsyncpa [#allocation3], 1
    %122 = vsyncpa [#allocation4], 1

</llo_original>
